<compile_context>
chip_gen: v5e
topology: v5e:2x2
jax: 0.10.0
libtpu: 0.0.40
codegen_flags: <defaults>
</compile_context>

<pallas_src>
import functools

import jax
import jax.numpy as jnp
from jax import lax
from jax.experimental import pallas as pl
from jax.experimental.pallas import tpu as pltpu


def _round_up(x, m):
    return ((x + m - 1) // m) * m


def _cdiv(a, b):
    return -(-a // b)


# ----------------------------- Pallas kernel ------------------------------ #
# Hot path: two folded (conv1x1 + BN) layers with ReLU, then max over the K
# (nsample) neighbor axis.  BN scales are pre-folded into the weights, so each
# layer is one bf16 matmul (f32 accum) + bias + ReLU.
def _mlp_max_kernel(feat_ref, w1_ref, b1_ref, w2_ref, b2_ref, out_ref, *,
                    nsample):
    x = feat_ref[...]                                    # (tile*K, Cin) bf16
    h = jnp.dot(x, w1_ref[...], preferred_element_type=jnp.float32)
    h = jnp.maximum(h + b1_ref[...], 0.0)                # (tile*K, C1p) f32
    h = jnp.dot(h.astype(w2_ref.dtype), w2_ref[...],
                preferred_element_type=jnp.float32)
    h = jnp.maximum(h + b2_ref[...], 0.0)                # (tile*K, C2p) f32
    tk, c2p = h.shape
    # max over the nsample (K) axis -> one feature row per sampled point.
    # K is a multiple of 8, so this reshape is a pure sublane regrouping.
    out_ref[...] = jnp.max(
        h.reshape(tk // nsample, nsample, c2p), axis=1).astype(out_ref.dtype)


def mlp_max_pallas(feat, w1, b1, w2, b2):
    """feat: [M, K, Cin] (M = B*npoint, K % 8 == 0).  Returns [M, C2_padded] bf16."""
    M, K, Cin = feat.shape
    C1p = w1.shape[1]
    C2p = w2.shape[1]                                    # lane-padded to 128

    # --- balanced tiling -------------------------------------------------- #
    # VMEM budget: feat block (tile*K, Cin) lane-pads Cin->128 and is double
    # buffered (bf16), f32 intermediates are (tile*K, 128): tile*K <= 8192
    # keeps the whole working set ~<=13 MiB (safe under the 32 MiB scoped
    # limit on v5e/v6e/v7x; v7x physical VMEM is only 64 MiB).
    max_tile = max(8, min(1024, 8192 // max(K, 1)))
    num_tiles = max(1, _cdiv(M, max_tile))
    if M >= 16:
        num_tiles = max(num_tiles, 2)   # >=2 parallel steps so both v7x TCs work
    tile = max(8, _round_up(_cdiv(M, num_tiles), 8))
    num_tiles = _cdiv(M, tile)
    Mp = num_tiles * tile

    # Flat 2D slab: clean strided DMA, no in-kernel load reshape.
    flat = feat.reshape(M * K, Cin).astype(jnp.bfloat16)
    if Mp != M:
        flat = jnp.pad(flat, ((0, (Mp - M) * K), (0, 0)))

    out = pl.pallas_call(
        functools.partial(_mlp_max_kernel, nsample=K),
        out_shape=jax.ShapeDtypeStruct((Mp, C2p), jnp.bfloat16),
        grid_spec=pltpu.PrefetchScalarGridSpec(
            num_scalar_prefetch=0,
            grid=(num_tiles,),
            in_specs=[
                pl.BlockSpec((tile * K, Cin), lambda i: (i, 0)),
                pl.BlockSpec((Cin, C1p), lambda i: (0, 0)),
                pl.BlockSpec((1, C1p), lambda i: (0, 0)),
                pl.BlockSpec((C1p, C2p), lambda i: (0, 0)),
                pl.BlockSpec((1, C2p), lambda i: (0, 0)),
            ],
            out_specs=pl.BlockSpec((tile, C2p), lambda i: (i, 0)),
        ),
        compiler_params=pltpu.CompilerParams(
            dimension_semantics=("parallel",),
            vmem_limit_bytes=32 * 1024 * 1024,
        ),
    )(flat, w1, b1, w2, b2)
    return out[:M]


# ------------------------------ JAX glue ----------------------------------- #
def index_points(points, idx):
    """points: [B, N, C], idx: [B, ...] int -> [B, ..., C]."""
    return jax.vmap(lambda p, i: p[i])(points, idx)


def square_distance(src, dst):
    """src: [B, S, 3], dst: [B, N, 3] -> squared pairwise distance [B, S, N].

    ||s||^2 + ||d||^2 - 2 s.d^T (batched matmul) — avoids the [B,S,N,3]
    broadcast intermediate and runs the SxN work on the MXU.
    """
    s2 = jnp.sum(src * src, axis=-1, keepdims=True)               # [B, S, 1]
    d2 = jnp.sum(dst * dst, axis=-1, keepdims=True)               # [B, N, 1]
    cross = jnp.einsum("bsc,bnc->bsn", src, dst)                  # [B, S, N]
    return jnp.maximum(s2 - 2.0 * cross + jnp.swapaxes(d2, 1, 2), 0.0)


def farthest_point_sample(xyz, npoint):
    """xyz: [B, N, 3] -> indices [B, npoint]."""
    B, N, _ = xyz.shape

    def body(i, state):
        centroids, distance, farthest = state
        centroids = centroids.at[:, i].set(farthest)
        centroid = index_points(xyz, farthest[:, None])           # [B, 1, 3]
        dist = jnp.sum((xyz - centroid) ** 2, axis=-1)            # [B, N]
        distance = jnp.minimum(distance, dist)
        farthest = jnp.argmax(distance, axis=-1).astype(jnp.int32)
        return centroids, distance, farthest

    centroids = jnp.zeros((B, npoint), dtype=jnp.int32)
    distance = jnp.full((B, N), 1e10, dtype=xyz.dtype)
    farthest = jnp.zeros((B,), dtype=jnp.int32)
    centroids, _, _ = lax.fori_loop(0, npoint, body,
                                    (centroids, distance, farthest))
    return centroids


def _sample_and_group(xyz, points, npoint, nsample):
    """Shared FPS + kNN + grouping path.  Returns (new_xyz, idx)."""
    fps_idx = farthest_point_sample(xyz, npoint)                  # [B, S]
    new_xyz = index_points(xyz, fps_idx)                          # [B, S, 3]
    dists = square_distance(new_xyz, xyz)                         # [B, S, N]
    _, idx = lax.top_k(-dists, nsample)                           # [B, S, K]
    return new_xyz, idx


def transition_down(params, xyz, points, *, npoint, nsample, out_channels):
    """Forward of TransitionDown.

    xyz:    [B, N, 3]
    points: [B, N, D]        (D = channels[0] - 3)
    returns (new_xyz [B, npoint, 3], new_points [B, npoint, channels[-1]])
    """
    B, N, _ = xyz.shape
    w1, b1, w2, b2 = params                                       # f32, padded

    new_xyz, idx = _sample_and_group(xyz, points, npoint, nsample)

    # Pad K to a multiple of 8 by duplicating the last neighbor (max unchanged)
    # so the in-kernel neighbor-max reshape stays a pure sublane regrouping.
    K = nsample
    Kp = _round_up(K, 8)
    if Kp != K:
        pad = jnp.broadcast_to(idx[..., -1:], idx.shape[:-1] + (Kp - K,))
        idx = jnp.concatenate([idx, pad], axis=-1)

    grouped_xyz = index_points(xyz, idx)                          # [B, S, Kp, 3]
    grouped_xyz_norm = (grouped_xyz - new_xyz[:, :, None, :]).astype(jnp.bfloat16)
    # Gather the per-point features already in bf16: the K-expanded tensor is
    # the dominant HBM intermediate, bf16 halves its bytes.
    grouped_points = index_points(points.astype(jnp.bfloat16), idx)  # [B, S, Kp, D]
    feat = jnp.concatenate([grouped_xyz_norm, grouped_points], axis=-1)

    # shared MLP + max over neighbors, inside the Pallas kernel
    M = B * npoint
    feat = feat.reshape(M, Kp, feat.shape[-1])
    out = mlp_max_pallas(feat, w1.astype(jnp.bfloat16), b1,
                         w2.astype(jnp.bfloat16), b2)             # [M, C2p] bf16
    new_points = out[:, :out_channels].astype(jnp.float32).reshape(
        B, npoint, out_channels)
    return new_xyz, new_points


def transition_down_ref(params, xyz, points, *, npoint, nsample, out_channels):
    """Pure-JAX f32 reference (no Pallas, no bf16) of the same forward pass."""
    w1, b1, w2, b2 = params
    new_xyz, idx = _sample_and_group(xyz, points, npoint, nsample)
    grouped_xyz_norm = index_points(xyz, idx) - new_xyz[:, :, None, :]
    feat = jnp.concatenate([grouped_xyz_norm, index_points(points, idx)], axis=-1)
    h = jnp.maximum(jnp.einsum("bskc,cd->bskd", feat, w1) + b1[0], 0.0)
    h = jnp.maximum(jnp.einsum("bskc,cd->bskd", h, w2) + b2[0], 0.0)
    new_points = jnp.max(h, axis=2)[..., :out_channels]
    return new_xyz, new_points


# ------------------------- deterministic parameters ------------------------ #
def init_folded_mlp_params(key, channels, eps=1e-5, lane=128):
    """channels = [Cin, C1, C2].  Conv2d(1x1) + eval-mode BatchNorm2d.

    BN scale is folded into the conv weights (w' = w * scale); the hidden dim
    and the output dim are zero-padded to multiples of 128 lanes.  Weights are
    kept in f32 here (cast to bf16 at the kernel call).
    Returns ((w1, b1, w2, b2), out_channels).
    """
    layers = []
    cin = channels[0]
    for cout in channels[1:]:
        key, kw, kb, kg, kbeta, km, kv = jax.random.split(key, 7)
        w = jax.random.normal(kw, (cin, cout), jnp.float32) / jnp.sqrt(cin)
        conv_b = 0.01 * jax.random.normal(kb, (cout,), jnp.float32)
        gamma = jax.random.uniform(kg, (cout,), jnp.float32, 0.5, 1.5)
        beta = 0.1 * jax.random.normal(kbeta, (cout,), jnp.float32)
        running_mean = 0.1 * jax.random.normal(km, (cout,), jnp.float32)
        running_var = jax.random.uniform(kv, (cout,), jnp.float32, 0.5, 1.5)
        scale = gamma / jnp.sqrt(running_var + eps)
        bias = (conv_b - running_mean) * scale + beta
        layers.append((w * scale[None, :], bias))        # fold BN scale into W
        cin = cout

    assert len(layers) == 2, "kernel implements the 2-layer shared MLP"
    (w1, b1), (w2, b2) = layers
    c1, c2 = w1.shape[1], w2.shape[1]
    c1p = _round_up(c1, lane)    # lane-dense hidden: no relayout around the bf16 repack
    c2p = _round_up(c2, lane)    # lane-dense (unmasked) output stores
    w1 = jnp.pad(w1, ((0, 0), (0, c1p - c1)))
    b1 = jnp.pad(b1, ((0, c1p - c1),))
    w2 = jnp.pad(w2, ((0, c1p - c1), (0, c2p - c2)))
    b2 = jnp.pad(b2, ((0, c2p - c2),))
    params = (w1, b1[None, :], w2, b2[None, :])
    return params, c2


# ---------------------------------- main ----------------------------------- #
if __name__ == "__main__":
    key = jax.random.PRNGKey(0)
    kx, kp, kw = jax.random.split(key, 3)

    # TransitionDown(k=16, nneighbor=8, channels=[32, 32, 64])
    B, N = 2, 64
    k_points, nneighbor = 16, 8
    channels = [32, 32, 64]
    D = channels[0] - 3                      # per-point feature dim = 29

    xyz = jax.random.normal(kx, (B, N, 3), jnp.float32)
    points = jax.random.normal(kp, (B, N, D), jnp.float32)
    params, out_channels = init_folded_mlp_params(kw, channels)

    fwd = jax.jit(functools.partial(transition_down,
                                    npoint=k_points, nsample=nneighbor,
                                    out_channels=out_channels))
    new_xyz, new_points = fwd(params, xyz, points)
    jax.block_until_ready((new_xyz, new_points))

    assert new_xyz.shape == (B, k_points, 3), new_xyz.shape
    assert new_points.shape == (B, k_points, channels[-1]), new_points.shape
    assert jnp.all(jnp.isfinite(new_xyz)) and jnp.all(jnp.isfinite(new_points))

    # Tolerance-tested pure-JAX f32 reference (same FPS/kNN path, unfused math).
    ref_fn = jax.jit(functools.partial(transition_down_ref,
                                       npoint=k_points, nsample=nneighbor,
                                       out_channels=out_channels))
    ref_xyz, ref_points = ref_fn(params, xyz, points)
    jax.block_until_ready((ref_xyz, ref_points))
    assert jnp.allclose(new_xyz, ref_xyz), "sampled coordinates mismatch"
    max_err = float(jnp.max(jnp.abs(new_points - ref_points)))
    assert max_err < 0.1, f"bf16 kernel deviates from f32 reference: {max_err}"

    print("KERNEL_OK")
</pallas_src>

<mosaic_0001>
module attributes {stable_mosaic.version = 11 : i64} {
  func.func @_mlp_max_kernel(%arg0: i32, %arg1: memref<128x32xbf16, #tpu.memory_space<vmem>>, %arg2: memref<32x128xbf16, #tpu.memory_space<vmem>>, %arg3: memref<1x128xf32, #tpu.memory_space<vmem>>, %arg4: memref<128x128xbf16, #tpu.memory_space<vmem>>, %arg5: memref<1x128xf32, #tpu.memory_space<vmem>>, %arg6: memref<16x128xbf16, #tpu.memory_space<vmem>>) attributes {dimension_semantics = [#tpu.dimension_semantics<parallel>], iteration_bounds = array<i64: 2>, scalar_prefetch = 0 : i64, scratch_operands = 0 : i64, tpu.core_type = #tpu.core_type<tc>, window_params = [{transform_indices = @transform_0, window_bounds = array<i64: 128, 32>}, {pipeline_mode = #tpu.pipeline_mode<synchronous>, transform_indices = @transform_1, window_bounds = array<i64: 32, 128>}, {pipeline_mode = #tpu.pipeline_mode<synchronous>, transform_indices = @transform_2, window_bounds = array<i64: 1, 128>}, {pipeline_mode = #tpu.pipeline_mode<synchronous>, transform_indices = @transform_3, window_bounds = array<i64: 128, 128>}, {pipeline_mode = #tpu.pipeline_mode<synchronous>, transform_indices = @transform_4, window_bounds = array<i64: 1, 128>}, {transform_indices = @transform_5, window_bounds = array<i64: 16, 128>}]} {
    %c0 = arith.constant 0 : index
    %c0_0 = arith.constant 0 : index
    %0 = vector.load %arg1[%c0, %c0_0] : memref<128x32xbf16, #tpu.memory_space<vmem>>, vector<128x32xbf16>
    %c0_1 = arith.constant 0 : index
    %c0_2 = arith.constant 0 : index
    %1 = vector.load %arg2[%c0_1, %c0_2] : memref<32x128xbf16, #tpu.memory_space<vmem>>, vector<32x128xbf16>
    %cst = arith.constant dense<0.000000e+00> : vector<128x128xf32>
    %2 = tpu.matmul %0, %1, %cst {dimension_numbers = #tpu.dot_dimension_numbers<[1], [0], [0], [1], [0, 0, 1, 1], [], []>} : vector<128x32xbf16>, vector<32x128xbf16>, vector<128x128xf32> -> vector<128x128xf32>
    %c0_3 = arith.constant 0 : index
    %c0_4 = arith.constant 0 : index
    %3 = vector.load %arg3[%c0_3, %c0_4] : memref<1x128xf32, #tpu.memory_space<vmem>>, vector<1x128xf32>
    %4 = vector.broadcast %3 : vector<1x128xf32> to vector<128x128xf32>
    %5 = arith.addf %2, %4 : vector<128x128xf32>
    %cst_5 = arith.constant 0.000000e+00 : f32
    %6 = vector.broadcast %cst_5 : f32 to vector<128x128xf32>
    %7 = arith.maximumf %5, %6 : vector<128x128xf32>
    %8 = arith.truncf %7 : vector<128x128xf32> to vector<128x128xbf16>
    %c0_6 = arith.constant 0 : index
    %c0_7 = arith.constant 0 : index
    %9 = vector.load %arg4[%c0_6, %c0_7] : memref<128x128xbf16, #tpu.memory_space<vmem>>, vector<128x128xbf16>
    %cst_8 = arith.constant dense<0.000000e+00> : vector<128x128xf32>
    %10 = tpu.matmul %8, %9, %cst_8 {dimension_numbers = #tpu.dot_dimension_numbers<[1], [0], [0], [1], [0, 0, 1, 1], [], []>} : vector<128x128xbf16>, vector<128x128xbf16>, vector<128x128xf32> -> vector<128x128xf32>
    %c0_9 = arith.constant 0 : index
    %c0_10 = arith.constant 0 : index
    %11 = vector.load %arg5[%c0_9, %c0_10] : memref<1x128xf32, #tpu.memory_space<vmem>>, vector<1x128xf32>
    %12 = vector.broadcast %11 : vector<1x128xf32> to vector<128x128xf32>
    %13 = arith.addf %10, %12 : vector<128x128xf32>
    %cst_11 = arith.constant 0.000000e+00 : f32
    %14 = vector.broadcast %cst_11 : f32 to vector<128x128xf32>
    %15 = arith.maximumf %13, %14 : vector<128x128xf32>
    %16 = vector.shape_cast %15 : vector<128x128xf32> to vector<16x8x128xf32>
    %cst_12 = arith.constant dense<0xFF800000> : vector<16x128xf32>
    %17 = vector.multi_reduction <maximumf>, %16, %cst_12 [1] : vector<16x8x128xf32> to vector<16x128xf32>
    %18 = arith.truncf %17 : vector<16x128xf32> to vector<16x128xbf16>
    %c0_13 = arith.constant 0 : index
    %c0_14 = arith.constant 0 : index
    %19 = vector.load %arg6[%c0_13, %c0_14] : memref<16x128xbf16, #tpu.memory_space<vmem>>, vector<16x128xbf16>
    tpu.vector_store %arg6[%c0_13, %c0_14], %18 {strides = array<i32>} : memref<16x128xbf16, #tpu.memory_space<vmem>>, vector<16x128xbf16>,
    return
  }
  func.func @transform_0(%arg0: i32) -> (i32, i32) {
    %c0_i32 = arith.constant 0 : i32
    %c0_i32_0 = arith.constant 0 : i32
    return %arg0, %c0_i32 : i32, i32
  }
  func.func @transform_1(%arg0: i32) -> (i32, i32) {
    %c0_i32 = arith.constant 0 : i32
    %c0_i32_0 = arith.constant 0 : i32
    %c0_i32_1 = arith.constant 0 : i32
    return %c0_i32, %c0_i32_0 : i32, i32
  }
  func.func @transform_2(%arg0: i32) -> (i32, i32) {
    %c0_i32 = arith.constant 0 : i32
    %c0_i32_0 = arith.constant 0 : i32
    %c0_i32_1 = arith.constant 0 : i32
    return %c0_i32, %c0_i32_0 : i32, i32
  }
  func.func @transform_3(%arg0: i32) -> (i32, i32) {
    %c0_i32 = arith.constant 0 : i32
    %c0_i32_0 = arith.constant 0 : i32
    %c0_i32_1 = arith.constant 0 : i32
    return %c0_i32, %c0_i32_0 : i32, i32
  }
  func.func @transform_4(%arg0: i32) -> (i32, i32) {
    %c0_i32 = arith.constant 0 : i32
    %c0_i32_0 = arith.constant 0 : i32
    %c0_i32_1 = arith.constant 0 : i32
    return %c0_i32, %c0_i32_0 : i32, i32
  }
  func.func @transform_5(%arg0: i32) -> (i32, i32) {
    %c0_i32 = arith.constant 0 : i32
    %c0_i32_0 = arith.constant 0 : i32
    return %arg0, %c0_i32 : i32, i32
  }
}

</mosaic_0001>

<llo_original>
// kernel: custom-call.8
$region0: #{custom-call.8}
  %s0 = inlined_call_operand.vmem [shape: f32[2,64], index: 0, kind: output, shape index: {}]

// kernel: transition_down.1
$region0: #{transition_down.1}
  #allocation0 [shape = 'u32[]', space=smem, size = 0x4, offset = 0x4, fixed_abs, tag = 'smem constant byte address 0x4 - core index']
  #allocation1 [shape = 'u32[72,128]{1,0:T(1,128)}', space=vmem, size = 0x9000, scoped, tag = 'internal scratch']
  %s0 = inlined_call_operand.vmem [shape: bf16[256,32], index: 0, kind: input, shape index: {}]
  %s1 = inlined_call_operand.vmem [shape: bf16[32,128], index: 1, kind: input, shape index: {}]
  %s2 = inlined_call_operand.vmem [shape: f32[1,128], index: 2, kind: input, shape index: {}]
  %s3 = inlined_call_operand.vmem [shape: bf16[128,128], index: 3, kind: input, shape index: {}]
  %s4 = inlined_call_operand.vmem [shape: f32[1,128], index: 4, kind: input, shape index: {}]
  %s5 = inlined_call_operand.vmem [shape: bf16[32,128], index: 5, kind: output, shape index: {}]
  %s6 = sld [smem:[#allocation0]]
  $region53: #{transition_down.1} parent=0
    _
  %s8 = ssub.s32 1, %s6
  %s9 = scalar_select 0, %s8, %s6
  loop: start=0, step=1, limit=4
  $region2: #{transition_down.1} parent=0 // loop_pre_header
    _
  $region3: #{transition_down.1} parent=0 // loop_header
    %s11 = sphi 0, %s15
    %p12 = scmp.ge.s32.totalorder %s11, 4
    %s21 = sphi 0, %s23
    %s24 = sphi 0, %s21
    %s25 = sphi 0, %s24
    %s41 = sphi 0, %s25
    %s45 = sphi 0, %s45
    %s47 = sphi 0, %s45
    %s48 = sphi 0, %s47
    %s62 = sphi 0, %s48
    %s66 = sphi 0, %s66
    %s68 = sphi 0, %s66
    %s69 = sphi 0, %s68
    %s83 = sphi 0, %s69
    %s87 = sphi 0, %s87
    %s89 = sphi 0, %s87
    %s90 = sphi 0, %s89
    %s104 = sphi 0, %s90
    %s108 = sphi 0, %s108
    %s110 = sphi 0, %s108
    %s111 = sphi 0, %s110
    %s125 = sphi 0, %s111
    %s131 = sphi 0, %s133
    %s134 = sphi 0, %s131
    %s135 = sphi 0, %s134
    %s151 = sphi 0, %s135
  $region4: #{transition_down.1} parent=0 // loop_header_branch
    %14 = sbr.rel (%p12) target = $region8
  $region5: #{transition_down.1} parent=0 // loop_body
    %s16 = ssub.s32 %s11, 1
    %s17 = ssub.s32 %s11, 2
    %s18 = sadd.s32 %s11, 1
    %s19 = ssub.s32 %s11, %s18
    %p20 = scmp.eq.s32.totalorder %s19, 0
    %s22 = sadd.s32 %s21, 1
    %s23 = scalar_select %p20, %s21, %s22
    %p26 = pneg %p20
    %p27 = scmp.eq.s32.totalorder %s11, 1
    %p28 = por %p26, %p27
    %p29 = scmp.ne.s32.totalorder %s21, %s24
    %p30 = scmp.eq.s32.totalorder %s11, 0
    %p31 = por %p29, %p30
    %p32 = scmp.ne.s32.totalorder %s21, %s24
    %p33 = scmp.eq.s32.totalorder %s16, 1
    %p34 = por %p32, %p33
    %p35 = scmp.ne.s32.totalorder %s24, %s25
    %p36 = scmp.eq.s32.totalorder %s16, 0
    %p37 = por %p35, %p36
    %p38 = scmp.ne.s32.totalorder %s24, %s25
    %p39 = scmp.eq.s32.totalorder %s17, 1
    %p40 = por %p38, %p39
    %p42 = scmp.ne.s32.totalorder %s25, %s41
    %p43 = scmp.eq.s32.totalorder %s17, 0
    %p44 = por %p42, %p43
    %s46 = sadd.s32 %s45, 1
    %p49 = scmp.eq.s32.totalorder %s11, 1
    %p50 = scmp.ne.s32.totalorder %s45, %s47
    %p51 = scmp.eq.s32.totalorder %s11, 0
    %p52 = por %p50, %p51
    %p53 = scmp.ne.s32.totalorder %s45, %s47
    %p54 = scmp.eq.s32.totalorder %s16, 1
    %p55 = por %p53, %p54
    %p56 = scmp.ne.s32.totalorder %s47, %s48
    %p57 = scmp.eq.s32.totalorder %s16, 0
    %p58 = por %p56, %p57
    %p59 = scmp.ne.s32.totalorder %s47, %s48
    %p60 = scmp.eq.s32.totalorder %s17, 1
    %p61 = por %p59, %p60
    %p63 = scmp.ne.s32.totalorder %s48, %s62
    %p64 = scmp.eq.s32.totalorder %s17, 0
    %p65 = por %p63, %p64
    %s67 = sadd.s32 %s66, 1
    %p70 = scmp.eq.s32.totalorder %s11, 1
    %p71 = scmp.ne.s32.totalorder %s66, %s68
    %p72 = scmp.eq.s32.totalorder %s11, 0
    %p73 = por %p71, %p72
    %p74 = scmp.ne.s32.totalorder %s66, %s68
    %p75 = scmp.eq.s32.totalorder %s16, 1
    %p76 = por %p74, %p75
    %p77 = scmp.ne.s32.totalorder %s68, %s69
    %p78 = scmp.eq.s32.totalorder %s16, 0
    %p79 = por %p77, %p78
    %p80 = scmp.ne.s32.totalorder %s68, %s69
    %p81 = scmp.eq.s32.totalorder %s17, 1
    %p82 = por %p80, %p81
    %p84 = scmp.ne.s32.totalorder %s69, %s83
    %p85 = scmp.eq.s32.totalorder %s17, 0
    %p86 = por %p84, %p85
    %s88 = sadd.s32 %s87, 1
    %p91 = scmp.eq.s32.totalorder %s11, 1
    %p92 = scmp.ne.s32.totalorder %s87, %s89
    %p93 = scmp.eq.s32.totalorder %s11, 0
    %p94 = por %p92, %p93
    %p95 = scmp.ne.s32.totalorder %s87, %s89
    %p96 = scmp.eq.s32.totalorder %s16, 1
    %p97 = por %p95, %p96
    %p98 = scmp.ne.s32.totalorder %s89, %s90
    %p99 = scmp.eq.s32.totalorder %s16, 0
    %p100 = por %p98, %p99
    %p101 = scmp.ne.s32.totalorder %s89, %s90
    %p102 = scmp.eq.s32.totalorder %s17, 1
    %p103 = por %p101, %p102
    %p105 = scmp.ne.s32.totalorder %s90, %s104
    %p106 = scmp.eq.s32.totalorder %s17, 0
    %p107 = por %p105, %p106
    %s109 = sadd.s32 %s108, 1
    %p112 = scmp.eq.s32.totalorder %s11, 1
    %p113 = scmp.ne.s32.totalorder %s108, %s110
    %p114 = scmp.eq.s32.totalorder %s11, 0
    %p115 = por %p113, %p114
    %p116 = scmp.ne.s32.totalorder %s108, %s110
    %p117 = scmp.eq.s32.totalorder %s16, 1
    %p118 = por %p116, %p117
    %p119 = scmp.ne.s32.totalorder %s110, %s111
    %p120 = scmp.eq.s32.totalorder %s16, 0
    %p121 = por %p119, %p120
    %p122 = scmp.ne.s32.totalorder %s110, %s111
    %p123 = scmp.eq.s32.totalorder %s17, 1
    %p124 = por %p122, %p123
    %p126 = scmp.ne.s32.totalorder %s111, %s125
    %p127 = scmp.eq.s32.totalorder %s17, 0
    %p128 = por %p126, %p127
    %s129 = ssub.s32 %s11, %s18
    %p130 = scmp.eq.s32.totalorder %s129, 0
    %s132 = sadd.s32 %s131, 1
    %s133 = scalar_select %p130, %s131, %s132
    %p136 = pneg %p130
    %p137 = scmp.eq.s32.totalorder %s11, 1
    %p138 = por %p136, %p137
    %p139 = scmp.ne.s32.totalorder %s131, %s134
    %p140 = scmp.eq.s32.totalorder %s11, 0
    %p141 = por %p139, %p140
    %p142 = scmp.ne.s32.totalorder %s131, %s134
    %p143 = scmp.eq.s32.totalorder %s16, 1
    %p144 = por %p142, %p143
    %p145 = scmp.ne.s32.totalorder %s134, %s135
    %p146 = scmp.eq.s32.totalorder %s16, 0
    %p147 = por %p145, %p146
    %p148 = scmp.ne.s32.totalorder %s134, %s135
    %p149 = scmp.eq.s32.totalorder %s17, 1
    %p150 = por %p148, %p149
    %p152 = scmp.ne.s32.totalorder %s135, %s151
    %p153 = scmp.eq.s32.totalorder %s17, 0
    %p154 = por %p152, %p153
    %p155 = scmp.le.s32.totalorder 1, %s11
    %p156 = scmp.lt.s32.totalorder %s11, 3
    %p157 = pnand %p155, %p156
    %p158 = pneg %p157
    // Predicated region
    $region9: #{transition_down.1} parent=5 // pred_check
      _
    $region10: #{transition_down.1} parent=5 // pred_check_branch
      %160 = sbr.rel (%p157) target = $region12
    $region11: #{transition_down.1} parent=5 // pred_region
      %s161 = ssub.s32 %s11, 1
      // Predicated region
      $region13: #{transition_down.1} parent=11 // pred_check
        %p162 = pneg %p58
      $region14: #{transition_down.1} parent=11 // pred_check_branch
        %164 = sbr.rel (%p162) target = $region16
      $region15: #{transition_down.1} parent=11 // pred_region
        _
      $region16: #{transition_down.1} parent=11 // pred_fallthru
        _
      // Predicated region
      $region17: #{transition_down.1} parent=11 // pred_check
        %p165 = pneg %p79
      $region18: #{transition_down.1} parent=11 // pred_check_branch
        %167 = sbr.rel (%p165) target = $region20
      $region19: #{transition_down.1} parent=11 // pred_region
        _
      $region20: #{transition_down.1} parent=11 // pred_fallthru
        _
      // Predicated region
      $region21: #{transition_down.1} parent=11 // pred_check
        %p168 = pneg %p100
      $region22: #{transition_down.1} parent=11 // pred_check_branch
        %170 = sbr.rel (%p168) target = $region24
      $region23: #{transition_down.1} parent=11 // pred_region
        _
      $region24: #{transition_down.1} parent=11 // pred_fallthru
        _
      // Predicated region
      $region25: #{transition_down.1} parent=11 // pred_check
        %p171 = pneg %p121
      $region26: #{transition_down.1} parent=11 // pred_check_branch
        %173 = sbr.rel (%p171) target = $region28
      $region27: #{transition_down.1} parent=11 // pred_region
        _
      $region28: #{transition_down.1} parent=11 // pred_fallthru
        _
    $region12: #{transition_down.1} parent=5 // pred_fallthru
      _
    %p174 = scmp.lt.s32.totalorder %s11, 2
    // Predicated region
    $region29: #{transition_down.1} parent=5 // pred_check
      %p175 = pneg %p174
    $region30: #{transition_down.1} parent=5 // pred_check_branch
      %177 = sbr.rel (%p175) target = $region32
    $region31: #{transition_down.1} parent=5 // pred_region
      // Predicated region
      $region33: #{transition_down.1} parent=31 // pred_check
        %p178 = pneg %p31
      $region34: #{transition_down.1} parent=31 // pred_check_branch
        %180 = sbr.rel (%p178) target = $region36
      $region35: #{transition_down.1} parent=31 // pred_region
        %s181 = smul.u32 16, %s11
        %p182 = scmp.lt.s32.totalorder %s181, 31
        %s183 = scalar_select %p182, %s181, 31
        %s184 = smul.addr %s183, 4
        %s185 = scalar_lea.vmem %s0, %s184
        %s186 = smul.u32 16, %s11
      $region36: #{transition_down.1} parent=31 // pred_fallthru
        _
    $region32: #{transition_down.1} parent=5 // pred_fallthru
      _
    %p187 = scmp.le.s32.totalorder 1, %s11
    %p188 = scmp.lt.s32.totalorder %s11, 3
    %p189 = pnand %p187, %p188
    %p190 = pneg %p189
    // Predicated region
    $region37: #{transition_down.1} parent=5 // pred_check
      _
    $region38: #{transition_down.1} parent=5 // pred_check_branch
      %192 = sbr.rel (%p189) target = $region40
    $region39: #{transition_down.1} parent=5 // pred_region
      %s193 = ssub.s32 %s11, 1
      %s194 = smul.u32 16, %s16
      %p195 = scmp.lt.s32.totalorder %s194, 31
      %s196 = scalar_select %p195, %s194, 31
      %s197 = smul.addr %s196, 4
      %s198 = scalar_lea.vmem %s0, %s197
      %p199 = pneg %p37
      %p200 = pneg %p34
      %p201 = pneg %p58
      %p202 = pneg %p55
      %p203 = pneg %p79
      %p204 = pneg %p76
      %p205 = pneg %p100
      %p206 = pneg %p97
      %p207 = pneg %p121
      %p208 = pneg %p118
      %p209 = pneg %p147
      %p210 = pneg %p144
      %s211 = smul.u32 2, %s16
      %p212 = scmp.lt.s32.totalorder %s211, 3
      %s213 = scalar_select %p212, %s211, 3
      %s214 = smul.addr %s213, 4
      %s215 = scalar_lea.vmem %s5, %s214
      %s216 = smul.u32 16, %s16
      %p217 = scmp.lt.s32.totalorder %s216, 31
      %s218 = scalar_select %p217, %s216, 31
      %s219 = smul.addr %s218, 4
      %s220 = scalar_lea.vmem %s0, %s219
      %s221 = smul.u32 16, %s16
      %s222 = smul.u32 2, %s16
      %p223 = scmp.lt.s32.totalorder %s222, 3
      %s224 = scalar_select %p223, %s222, 3
      %s225 = smul.addr %s224, 4
      %s226 = scalar_lea.vmem %s5, %s225
      %s227 = smul.u32 2, %s16
      %v229 = vld [vmem:[%s220] sm:$0xf]
      %v230 = vld [vmem:[%s220 + $0x4] sm:$0xf]
      %v231 = vld [vmem:[%s220 + $0x8] sm:$0xf]
      %v232 = vld [vmem:[%s220 + $0xc] sm:$0xf]
      %v233 = vld [vmem:[%s220 + $0x10] sm:$0xf]
      %v234 = vld [vmem:[%s220 + $0x14] sm:$0xf]
      %v235 = vld [vmem:[%s220 + $0x18] sm:$0xf]
      %v236 = vld [vmem:[%s220 + $0x1c] sm:$0xf]
      %v237 = vld [vmem:[%s220 + $0x20] sm:$0xf]
      %v238 = vld [vmem:[%s220 + $0x24] sm:$0xf]
      %v239 = vld [vmem:[%s220 + $0x28] sm:$0xf]
      %v240 = vld [vmem:[%s220 + $0x2c] sm:$0xf]
      %v241 = vld [vmem:[%s220 + $0x30] sm:$0xf]
      %v242 = vld [vmem:[%s220 + $0x34] sm:$0xf]
      %v243 = vld [vmem:[%s220 + $0x38] sm:$0xf]
      %v244 = vld [vmem:[%s220 + $0x3c] sm:$0xf]
      %v245 = vld [vmem:[%s1] sm:$0xf]
      %v246 = vld [vmem:[%s1 + $0x4] sm:$0xf]
      %v247 = vld [vmem:[%s1 + $0x8] sm:$0xf]
      %v248 = vld [vmem:[%s1 + $0xc] sm:$0xf]
      %v249 = vld [vmem:[%s2] sm:$0x1]
      %v251 = vperm.slane %v249, 0
      %v269 = vunpack.c.l.b16 %v229
      %v270 = vunpack.c.l.b16 %v230
      %v271 = vunpack.c.l.b16 %v231
      %v272 = vunpack.c.l.b16 %v232
      %v273 = vunpack.c.l.b16 %v233
      %v274 = vunpack.c.l.b16 %v234
      %v275 = vunpack.c.l.b16 %v235
      %v276 = vunpack.c.l.b16 %v236
      %v277 = vunpack.c.l.b16 %v237
      %v278 = vunpack.c.l.b16 %v238
      %v279 = vunpack.c.l.b16 %v239
      %v280 = vunpack.c.l.b16 %v240
      %v281 = vunpack.c.l.b16 %v241
      %v282 = vunpack.c.l.b16 %v242
      %v283 = vunpack.c.l.b16 %v243
      %v284 = vunpack.c.l.b16 %v244
      %v285 = vpack.c.b16 %v270, %v269
      %v286 = vpack.c.b16 %v272, %v271
      %v287 = vpack.c.b16 %v274, %v273
      %v288 = vpack.c.b16 %v276, %v275
      %v289 = vpack.c.b16 %v278, %v277
      %v290 = vpack.c.b16 %v280, %v279
      %v291 = vpack.c.b16 %v282, %v281
      %v292 = vpack.c.b16 %v284, %v283
      %v297 = vunpack.c.l.b16 %v245
      %v298 = vunpack.c.l.b16 %v246
      %v299 = vunpack.c.l.b16 %v247
      %v300 = vunpack.c.l.b16 %v248
      %v301 = vpack.c.b16 %v298, %v297
      %v302 = vpack.c.b16 %v300, %v299
      %vm305 = vcmask 261120
      %v307 = vsel %vm305, %v285, 0
      %v310 = vsel %vm305, %v286, 0
      %v313 = vsel %vm305, %v287, 0
      %v316 = vsel %vm305, %v288, 0
      %v319 = vsel %vm305, %v289, 0
      %v322 = vsel %vm305, %v290, 0
      %v325 = vsel %vm305, %v291, 0
      %v328 = vsel %vm305, %v292, 0
      %330 = vmatpush.bf16.msra.mxu0 0
      %331 = vmatpush.bf16.msra.mxu0 0
      %332 = vmatpush.bf16.msra.mxu0 0
      %333 = vmatpush.bf16.msra.mxu0 0
      %334 = vmatpush.bf16.msra.mxu0 0
      %335 = vmatpush.bf16.msra.mxu0 0
      %336 = vmatpush.bf16.msra.mxu0 %v302
      %337 = vmatpush.bf16.msra.mxu0 %v301
      %338 = vmatmul.bf16.gmra.mxu0 %v307
      %v339 = vpop.f32.mrf.mxu0
      %v340 = vadd.f32 %v251, %v339
      %v341 = vpop.f32.mrf.mxu0
      %v342 = vadd.f32 %v251, %v341
      %343 = vmatmul.bf16.gmra.mxu0 %v310
      %v344 = vpop.f32.mrf.mxu0
      %v345 = vadd.f32 %v251, %v344
      %v346 = vpop.f32.mrf.mxu0
      %v347 = vadd.f32 %v251, %v346
      %348 = vmatmul.bf16.gmra.mxu0 %v313
      %v349 = vpop.f32.mrf.mxu0
      %v350 = vadd.f32 %v251, %v349
      %v351 = vpop.f32.mrf.mxu0
      %v352 = vadd.f32 %v251, %v351
      %353 = vmatmul.bf16.gmra.mxu0 %v316
      %v354 = vpop.f32.mrf.mxu0
      %v355 = vadd.f32 %v251, %v354
      %v356 = vpop.f32.mrf.mxu0
      %v357 = vadd.f32 %v251, %v356
      %358 = vmatmul.bf16.gmra.mxu0 %v319
      %v359 = vpop.f32.mrf.mxu0
      %v360 = vadd.f32 %v251, %v359
      %v361 = vpop.f32.mrf.mxu0
      %v362 = vadd.f32 %v251, %v361
      %363 = vmatmul.bf16.gmra.mxu0 %v322
      %v364 = vpop.f32.mrf.mxu0
      %v365 = vadd.f32 %v251, %v364
      %v366 = vpop.f32.mrf.mxu0
      %v367 = vadd.f32 %v251, %v366
      %368 = vmatmul.bf16.gmra.mxu0 %v325
      %v369 = vpop.f32.mrf.mxu0
      %v370 = vadd.f32 %v251, %v369
      %v371 = vpop.f32.mrf.mxu0
      %v372 = vadd.f32 %v251, %v371
      %373 = vmatmul.bf16.gmra.mxu0 %v328
      %v374 = vpop.f32.mrf.mxu0
      %v375 = vadd.f32 %v251, %v374
      %v376 = vpop.f32.mrf.mxu0
      %v377 = vadd.f32 %v251, %v376
      %378 = vdwg.mxu0
      %v379 = vmax.f32 %v340, 0.0
      %v380 = vmax.f32 %v342, 0.0
      %v381 = vmax.f32 %v345, 0.0
      %v382 = vmax.f32 %v347, 0.0
      %v383 = vmax.f32 %v350, 0.0
      %v384 = vmax.f32 %v352, 0.0
      %v385 = vmax.f32 %v355, 0.0
      %v386 = vmax.f32 %v357, 0.0
      %v387 = vmax.f32 %v360, 0.0
      %v388 = vmax.f32 %v362, 0.0
      %v389 = vmax.f32 %v365, 0.0
      %v390 = vmax.f32 %v367, 0.0
      %v391 = vmax.f32 %v370, 0.0
      %v392 = vmax.f32 %v372, 0.0
      %v393 = vmax.f32 %v375, 0.0
      %v394 = vmax.f32 %v377, 0.0
      %v395 = vpack.c.bf16 %v380, %v379
      %v396 = vpack.c.bf16 %v382, %v381
      %v397 = vpack.c.bf16 %v384, %v383
      %v398 = vpack.c.bf16 %v386, %v385
      %v399 = vpack.c.bf16 %v388, %v387
      %v400 = vpack.c.bf16 %v390, %v389
      %v401 = vpack.c.bf16 %v392, %v391
      %v402 = vpack.c.bf16 %v394, %v393
      %v403 = vld [vmem:[%s3] sm:$0xf]
      %v404 = vld [vmem:[%s3 + $0x4] sm:$0xf]
      %v405 = vld [vmem:[%s3 + $0x8] sm:$0xf]
      %v406 = vld [vmem:[%s3 + $0xc] sm:$0xf]
      %v407 = vld [vmem:[%s3 + $0x10] sm:$0xf]
      %v408 = vld [vmem:[%s3 + $0x14] sm:$0xf]
      %v409 = vld [vmem:[%s3 + $0x18] sm:$0xf]
      %v410 = vld [vmem:[%s3 + $0x1c] sm:$0xf]
      %v411 = vld [vmem:[%s3 + $0x20] sm:$0xf]
      %v412 = vld [vmem:[%s3 + $0x24] sm:$0xf]
      %v413 = vld [vmem:[%s3 + $0x28] sm:$0xf]
      %v414 = vld [vmem:[%s3 + $0x2c] sm:$0xf]
      %v415 = vld [vmem:[%s3 + $0x30] sm:$0xf]
      %v416 = vld [vmem:[%s3 + $0x34] sm:$0xf]
      %v417 = vld [vmem:[%s3 + $0x38] sm:$0xf]
      %v418 = vld [vmem:[%s3 + $0x3c] sm:$0xf]
      %v419 = vld [vmem:[%s4] sm:$0x1]
      %v421 = vperm.slane %v419, 0
      %v439 = vunpack.c.l.b16 %v403
      %v440 = vunpack.c.l.b16 %v404
      %v441 = vunpack.c.l.b16 %v405
      %v442 = vunpack.c.l.b16 %v406
      %v443 = vunpack.c.l.b16 %v407
      %v444 = vunpack.c.l.b16 %v408
      %v445 = vunpack.c.l.b16 %v409
      %v446 = vunpack.c.l.b16 %v410
      %v447 = vunpack.c.l.b16 %v411
      %v448 = vunpack.c.l.b16 %v412
      %v449 = vunpack.c.l.b16 %v413
      %v450 = vunpack.c.l.b16 %v414
      %v451 = vunpack.c.l.b16 %v415
      %v452 = vunpack.c.l.b16 %v416
      %v453 = vunpack.c.l.b16 %v417
      %v454 = vunpack.c.l.b16 %v418
      %v455 = vpack.c.b16 %v440, %v439
      %v456 = vpack.c.b16 %v442, %v441
      %v457 = vpack.c.b16 %v444, %v443
      %v458 = vpack.c.b16 %v446, %v445
      %v459 = vpack.c.b16 %v448, %v447
      %v460 = vpack.c.b16 %v450, %v449
      %v461 = vpack.c.b16 %v452, %v451
      %v462 = vpack.c.b16 %v454, %v453
      %471 = vmatpush.bf16.msra.mxu0 %v462
      %472 = vmatpush.bf16.msra.mxu0 %v461
      %473 = vmatpush.bf16.msra.mxu0 %v460
      %474 = vmatpush.bf16.msra.mxu0 %v459
      %475 = vmatpush.bf16.msra.mxu0 %v458
      %476 = vmatpush.bf16.msra.mxu0 %v457
      %477 = vmatpush.bf16.msra.mxu0 %v456
      %478 = vmatpush.bf16.msra.mxu0 %v455
      %479 = vmatmul.bf16.gmra.mxu0 %v395
      %v480 = vpop.f32.mrf.mxu0
      %v481 = vadd.f32 %v421, %v480
      %v482 = vpop.f32.mrf.mxu0
      %v483 = vadd.f32 %v421, %v482
      %484 = vmatmul.bf16.gmra.mxu0 %v396
      %v485 = vpop.f32.mrf.mxu0
      %v486 = vadd.f32 %v421, %v485
      %v487 = vpop.f32.mrf.mxu0
      %v488 = vadd.f32 %v421, %v487
      %489 = vmatmul.bf16.gmra.mxu0 %v397
      %v490 = vpop.f32.mrf.mxu0
      %v491 = vadd.f32 %v421, %v490
      %v492 = vpop.f32.mrf.mxu0
      %v493 = vadd.f32 %v421, %v492
      %494 = vmatmul.bf16.gmra.mxu0 %v398
      %v495 = vpop.f32.mrf.mxu0
      %v496 = vadd.f32 %v421, %v495
      %v497 = vpop.f32.mrf.mxu0
      %v498 = vadd.f32 %v421, %v497
      %499 = vmatmul.bf16.gmra.mxu0 %v399
      %v500 = vpop.f32.mrf.mxu0
      %v501 = vadd.f32 %v421, %v500
      %v502 = vpop.f32.mrf.mxu0
      %v503 = vadd.f32 %v421, %v502
      %504 = vmatmul.bf16.gmra.mxu0 %v400
      %v505 = vpop.f32.mrf.mxu0
      %v506 = vadd.f32 %v421, %v505
      %v507 = vpop.f32.mrf.mxu0
      %v508 = vadd.f32 %v421, %v507
      %509 = vmatmul.bf16.gmra.mxu0 %v401
      %v510 = vpop.f32.mrf.mxu0
      %v511 = vadd.f32 %v421, %v510
      %v512 = vpop.f32.mrf.mxu0
      %v513 = vadd.f32 %v421, %v512
      %514 = vmatmul.bf16.gmra.mxu0 %v402
      %v515 = vpop.f32.mrf.mxu0
      %v516 = vadd.f32 %v421, %v515
      %v517 = vpop.f32.mrf.mxu0
      %v518 = vadd.f32 %v421, %v517
      %519 = vdwg.mxu0
      %v520 = vmax.f32 %v481, 0.0
      %v521 = vmax.f32 %v483, 0.0
      %v522 = vmax.f32 %v486, 0.0
      %v523 = vmax.f32 %v488, 0.0
      %v524 = vmax.f32 %v491, 0.0
      %v525 = vmax.f32 %v493, 0.0
      %v526 = vmax.f32 %v496, 0.0
      %v527 = vmax.f32 %v498, 0.0
      %v528 = vmax.f32 %v501, 0.0
      %v529 = vmax.f32 %v503, 0.0
      %v530 = vmax.f32 %v506, 0.0
      %v531 = vmax.f32 %v508, 0.0
      %v532 = vmax.f32 %v511, 0.0
      %v533 = vmax.f32 %v513, 0.0
      %v534 = vmax.f32 %v516, 0.0
      %v535 = vmax.f32 %v518, 0.0
      %v536 = vrot.slane %v520, 4
      %v537 = vmax.f32 %v520, %v536
      %v538 = vrot.slane %v537, 2
      %v539 = vmax.f32 %v537, %v538
      %v540 = vrot.slane %v539, 1
      %v541 = vmax.f32 %v539, %v540
      %v542 = vrot.slane %v521, 4
      %v543 = vmax.f32 %v521, %v542
      %v544 = vrot.slane %v543, 2
      %v545 = vmax.f32 %v543, %v544
      %v546 = vrot.slane %v545, 1
      %v547 = vmax.f32 %v545, %v546
      %v548 = vrot.slane %v522, 4
      %v549 = vmax.f32 %v522, %v548
      %v550 = vrot.slane %v549, 2
      %v551 = vmax.f32 %v549, %v550
      %v552 = vrot.slane %v551, 1
      %v553 = vmax.f32 %v551, %v552
      %v554 = vrot.slane %v523, 4
      %v555 = vmax.f32 %v523, %v554
      %v556 = vrot.slane %v555, 2
      %v557 = vmax.f32 %v555, %v556
      %v558 = vrot.slane %v557, 1
      %v559 = vmax.f32 %v557, %v558
      %v560 = vrot.slane %v524, 4
      %v561 = vmax.f32 %v524, %v560
      %v562 = vrot.slane %v561, 2
      %v563 = vmax.f32 %v561, %v562
      %v564 = vrot.slane %v563, 1
      %v565 = vmax.f32 %v563, %v564
      %v566 = vrot.slane %v525, 4
      %v567 = vmax.f32 %v525, %v566
      %v568 = vrot.slane %v567, 2
      %v569 = vmax.f32 %v567, %v568
      %v570 = vrot.slane %v569, 1
      %v571 = vmax.f32 %v569, %v570
      %v572 = vrot.slane %v526, 4
      %v573 = vmax.f32 %v526, %v572
      %v574 = vrot.slane %v573, 2
      %v575 = vmax.f32 %v573, %v574
      %v576 = vrot.slane %v575, 1
      %v577 = vmax.f32 %v575, %v576
      %v578 = vrot.slane %v527, 4
      %v579 = vmax.f32 %v527, %v578
      %v580 = vrot.slane %v579, 2
      %v581 = vmax.f32 %v579, %v580
      %v582 = vrot.slane %v581, 1
      %v583 = vmax.f32 %v581, %v582
      %v584 = vrot.slane %v528, 4
      %v585 = vmax.f32 %v528, %v584
      %v586 = vrot.slane %v585, 2
      %v587 = vmax.f32 %v585, %v586
      %v588 = vrot.slane %v587, 1
      %v589 = vmax.f32 %v587, %v588
      %v590 = vrot.slane %v529, 4
      %v591 = vmax.f32 %v529, %v590
      %v592 = vrot.slane %v591, 2
      %v593 = vmax.f32 %v591, %v592
      %v594 = vrot.slane %v593, 1
      %v595 = vmax.f32 %v593, %v594
      %v596 = vrot.slane %v530, 4
      %v597 = vmax.f32 %v530, %v596
      %v598 = vrot.slane %v597, 2
      %v599 = vmax.f32 %v597, %v598
      %v600 = vrot.slane %v599, 1
      %v601 = vmax.f32 %v599, %v600
      %v602 = vrot.slane %v531, 4
      %v603 = vmax.f32 %v531, %v602
      %v604 = vrot.slane %v603, 2
      %v605 = vmax.f32 %v603, %v604
      %v606 = vrot.slane %v605, 1
      %v607 = vmax.f32 %v605, %v606
      %v608 = vrot.slane %v532, 4
      %v609 = vmax.f32 %v532, %v608
      %v610 = vrot.slane %v609, 2
      %v611 = vmax.f32 %v609, %v610
      %v612 = vrot.slane %v611, 1
      %v613 = vmax.f32 %v611, %v612
      %v614 = vrot.slane %v533, 4
      %v615 = vmax.f32 %v533, %v614
      %v616 = vrot.slane %v615, 2
      %v617 = vmax.f32 %v615, %v616
      %v618 = vrot.slane %v617, 1
      %v619 = vmax.f32 %v617, %v618
      %v620 = vrot.slane %v534, 4
      %v621 = vmax.f32 %v534, %v620
      %v622 = vrot.slane %v621, 2
      %v623 = vmax.f32 %v621, %v622
      %v624 = vrot.slane %v623, 1
      %v625 = vmax.f32 %v623, %v624
      %v626 = vrot.slane %v535, 4
      %v627 = vmax.f32 %v535, %v626
      %v628 = vrot.slane %v627, 2
      %v629 = vmax.f32 %v627, %v628
      %v630 = vrot.slane %v629, 1
      %v631 = vmax.f32 %v629, %v630
      %v632 = vpack.c.bf16 %v541, %v541
      %v633 = vpack.c.bf16 %v547, %v547
      %v634 = vpack.c.bf16 %v553, %v553
      %v635 = vpack.c.bf16 %v559, %v559
      %v636 = vpack.c.bf16 %v565, %v565
      %v637 = vpack.c.bf16 %v571, %v571
      %v638 = vpack.c.bf16 %v577, %v577
      %v639 = vpack.c.bf16 %v583, %v583
      %v640 = vpack.c.bf16 %v589, %v589
      %v641 = vpack.c.bf16 %v595, %v595
      %v642 = vpack.c.bf16 %v601, %v601
      %v643 = vpack.c.bf16 %v607, %v607
      %v644 = vpack.c.bf16 %v613, %v613
      %v645 = vpack.c.bf16 %v619, %v619
      %v646 = vpack.c.bf16 %v625, %v625
      %v647 = vpack.c.bf16 %v631, %v631
      %v664 = vunpack.c.l.b16 %v632
      %v665 = vunpack.c.l.b16 %v633
      %v666 = vunpack.c.l.b16 %v634
      %v667 = vunpack.c.l.b16 %v635
      %v668 = vunpack.c.l.b16 %v636
      %v669 = vunpack.c.l.b16 %v637
      %v670 = vunpack.c.l.b16 %v638
      %v671 = vunpack.c.l.b16 %v639
      %v672 = vunpack.c.l.b16 %v640
      %v673 = vunpack.c.l.b16 %v641
      %v674 = vunpack.c.l.b16 %v642
      %v675 = vunpack.c.l.b16 %v643
      %v676 = vunpack.c.l.b16 %v644
      %v677 = vunpack.c.l.b16 %v645
      %v678 = vunpack.c.l.b16 %v646
      %v679 = vunpack.c.l.b16 %v647
      %vm680 = vcmask 1041409
      %v681 = vsel %vm680, %v665, %v664
      %vm682 = vcmask 1042434
      %v683 = vsel %vm682, %v666, %v681
      %vm684 = vcmask 1043459
      %v685 = vsel %vm684, %v667, %v683
      %vm686 = vcmask 1044484
      %v687 = vsel %vm686, %v668, %v685
      %vm688 = vcmask 1045509
      %v689 = vsel %vm688, %v669, %v687
      %vm690 = vcmask 1046534
      %v691 = vsel %vm690, %v670, %v689
      %vm692 = vcmask 1047559
      %v693 = vsel %vm692, %v671, %v691
      %v694 = vsel %vm680, %v673, %v672
      %v695 = vsel %vm682, %v674, %v694
      %v696 = vsel %vm684, %v675, %v695
      %v697 = vsel %vm686, %v676, %v696
      %v698 = vsel %vm688, %v677, %v697
      %v699 = vsel %vm690, %v678, %v698
      %v700 = vsel %vm692, %v679, %v699
      %v701 = vpack.c.b16 %v693, %v693
      %v702 = vpack.c.b16 %v700, %v700
      %705 = vst [vmem:[%s226] sm:$0xf] %v701
      %706 = vst [vmem:[%s226 + $0x4] sm:$0xf] %v702
      %s707 = smul.u32 2, %s16
      %p708 = scmp.lt.s32.totalorder %s707, 3
      %s709 = scalar_select %p708, %s707, 3
      %s710 = smul.addr %s709, 4
      %s711 = scalar_lea.vmem %s5, %s710
      // Predicated region
      $region41: #{transition_down.1} parent=39 // pred_check
        %p712 = pneg %p144
      $region42: #{transition_down.1} parent=39 // pred_check_branch
        %714 = sbr.rel (%p712) target = $region44
      $region43: #{transition_down.1} parent=39 // pred_region
        %s715 = smul.u32 2, %s16
      $region44: #{transition_down.1} parent=39 // pred_fallthru
        _
    $region40: #{transition_down.1} parent=5 // pred_fallthru
      _
    %p716 = scmp.le.s32.totalorder 2, %s11
    // Predicated region
    $region45: #{transition_down.1} parent=5 // pred_check
      %p717 = pneg %p716
    $region46: #{transition_down.1} parent=5 // pred_check_branch
      %719 = sbr.rel (%p717) target = $region48
    $region47: #{transition_down.1} parent=5 // pred_region
      %s720 = ssub.s32 %s11, 2
      // Predicated region
      $region49: #{transition_down.1} parent=47 // pred_check
        %p721 = pneg %p150
      $region50: #{transition_down.1} parent=47 // pred_check_branch
        %723 = sbr.rel (%p721) target = $region52
      $region51: #{transition_down.1} parent=47 // pred_region
        %s724 = smul.u32 2, %s17
        %p725 = scmp.lt.s32.totalorder %s724, 3
        %s726 = scalar_select %p725, %s724, 3
        %s727 = smul.addr %s726, 4
        %s728 = scalar_lea.vmem %s5, %s727
      $region52: #{transition_down.1} parent=47 // pred_fallthru
        _
    $region48: #{transition_down.1} parent=5 // pred_fallthru
      _
  $region6: #{transition_down.1} parent=0 // loop_footer
    %s15 = sadd.s32 1, %s11
  $region7: #{transition_down.1} parent=0 // loop_footer_branch
    %10 = sbr.rel target = $region3
  $region8: #{transition_down.1} parent=0 // loop_exit
    _

</llo_original>
